<compile_context>
chip_gen: v7x
topology: tpu7x:2x2x1
jax: 0.10.0
libtpu: 0.0.40
codegen_flags: <defaults>
</compile_context>

<pallas_src>
import functools

import jax
import jax.numpy as jnp
import numpy as np
from jax.experimental import pallas as pl
from jax.experimental.pallas import tpu as pltpu


# vec slab column layout (all (Cr, 1) vectors):
#  0 fc1_b   1 bn1_s   2 bn1_t
#  3 cr_b    4 bnr_s   5 bnr_t
#  6 d0_b    7 bnd0_s  8 bnd0_t
#  9 d1_b   10 bnd1_s 11 bnd1_t
def _modulator_kernel(
    x_ref,        # (Bb, C, HW)
    mask_ref,     # (9, L) f32 0/1 validity per tap, L = Bb*HW
    cw_ref,       # (2Cr, C): rows 0:Cr = spatial 1x1 reduce, Cr:2Cr = channel fc1
    vec_ref,      # (Cr, 12) small per-Cr vectors (see layout above)
    fc2_ref,      # (C, Cr+1): fc2 weight | fc2 bias
    dw_ref,       # (Cr, 18*Cr): dilated conv0 weight | conv1 weight
    cf_ref,       # (1, Cr+1): final 1x1 conv weight | bias
    o_ref,        # (Bb, C, HW)
    *, H, W, C, Cr, dilation, Bb,
):
    HW = H * W
    L = Bb * HW

    # ---- load the (tiny) packed parameters once ----
    vec = vec_ref[...]
    fc1_b, bn1_s, bn1_t = vec[:, 0:1], vec[:, 1:2], vec[:, 2:3]
    cr_b, bnr_s, bnr_t = vec[:, 3:4], vec[:, 4:5], vec[:, 5:6]
    d0_b, bnd0_s, bnd0_t = vec[:, 6:7], vec[:, 7:8], vec[:, 8:9]
    d1_b, bnd1_s, bnd1_t = vec[:, 9:10], vec[:, 10:11], vec[:, 11:12]
    cw = cw_ref[...]
    fc2_w = fc2_ref[:, :Cr]
    fc2_b = fc2_ref[:, Cr:Cr + 1]
    d0_w = dw_ref[:, :9 * Cr]
    d1_w = dw_ref[:, 9 * Cr:]
    cf_w = cf_ref[:, :Cr]
    cf_b = cf_ref[:, Cr:Cr + 1]
    masks = mask_ref[...]

    # static tap lane-shifts (shared by both convs; masks kill any wraparound)
    shifts = []
    for tap in range(9):
        i, j = tap // 3, tap % 3
        shifts.append(((i - 1) * dilation) * W + (j - 1) * dilation)

    # ---- lane-concatenate the batch block: (Bb, C, HW) -> (C, Bb*HW) ----
    if Bb == 1:
        x = x_ref[0].astype(jnp.float32)
    else:
        x = jnp.concatenate([x_ref[b].astype(jnp.float32) for b in range(Bb)],
                            axis=1)                                   # (C, L)

    # one fused C->2Cr MXU matmul feeds both branches
    t = jnp.dot(cw, x, preferred_element_type=jnp.float32)           # (2Cr, L)
    s_pre = t[:Cr, :]                                                 # 1x1 reduce
    c_pre = t[Cr:, :]                                                 # fc1 per pixel

    # ---------------- channel attention (per-image columns) ----------------
    # fc1(mean(x)) == mean(fc1(x)): per-image mean over the lane segment.
    if Bb == 1:
        h = jnp.mean(c_pre, axis=1, keepdims=True)                    # (Cr, 1)
    else:
        h = jnp.concatenate(
            [jnp.mean(c_pre[:, b * HW:(b + 1) * HW], axis=1, keepdims=True)
             for b in range(Bb)], axis=1)                             # (Cr, Bb)
    h = jnp.maximum((h + fc1_b) * bn1_s + bn1_t, 0.0)
    ch = fc2_b                                                        # (C, 1)->(C, Bb)
    for r in range(Cr):
        ch = ch + fc2_w[:, r:r + 1] * h[r:r + 1, :]

    # ---------------- spatial attention ----------------
    s = jnp.maximum((s_pre + cr_b) * bnr_s + bnr_t, 0.0)              # (Cr, L)

    def dilated_conv3x3(a, w, b):
        # im2col: 9 lane-rolled + masked tap maps -> (9*Cr, L), one MXU matmul.
        taps = []
        for tap in range(9):
            amt = (-shifts[tap]) % L
            rolled = a if amt == 0 else pltpu.roll(a, amt, axis=1)
            taps.append(rolled * masks[tap:tap + 1, :])
        s9 = jnp.concatenate(taps, axis=0)                            # (9Cr, L)
        return jnp.dot(w, s9, preferred_element_type=jnp.float32) + b

    s = jnp.maximum(dilated_conv3x3(s, d0_w, d0_b) * bnd0_s + bnd0_t, 0.0)
    s = jnp.maximum(dilated_conv3x3(s, d1_w, d1_b) * bnd1_s + bnd1_t, 0.0)
    sp = cf_b                                                         # (1,1)->(1,L)
    for r in range(Cr):
        sp = sp + cf_w[:, r:r + 1] * s[r:r + 1, :]

    # ---------------- combine: out = sigmoid(ch * sp) * x ----------------
    for b in range(Bb):
        z = ch[:, b:b + 1] * sp[:, b * HW:(b + 1) * HW]               # (C, HW)
        att = 0.5 * jnp.tanh(0.5 * z) + 0.5                           # exact sigmoid
        o_ref[b] = (att * x[:, b * HW:(b + 1) * HW]).astype(o_ref.dtype)


def _make_tap_masks(H, W, dilation, Bb):
    """Host-side (9, Bb*H*W) f32 validity masks (1 where the tap is in-bounds)."""
    HW = H * W
    hh, ww = np.divmod(np.arange(HW), W)
    rows = []
    for tap in range(9):
        i, j = tap // 3, tap % 3
        dh = (i - 1) * dilation
        dw = (j - 1) * dilation
        valid = ((hh + dh >= 0) & (hh + dh < H) &
                 (ww + dw >= 0) & (ww + dw < W))
        rows.append(valid.astype(np.float32))
    m = np.stack(rows, axis=0)                       # (9, HW)
    return jnp.asarray(np.tile(m, (1, Bb)))          # (9, Bb*HW)


def _pick_batch_block(B, C, HW, itemsize, target_bytes=2 << 20, max_block=32):
    """Images per grid step: multi-MiB steps, >= 2 (preferably even #) steps."""
    per_image = max(1, C * HW * itemsize)
    bb = max(1, min(max_block, target_bytes // per_image, B))
    if B >= 2:
        bb = max(1, min(bb, B // 2))                 # keep >= 2 steps (megacore)
    divisors = [d for d in range(bb, 0, -1) if B % d == 0]
    for d in divisors:                               # prefer an even step count
        if (B // d) % 2 == 0:
            return d
    return divisors[0]


def modulator_pallas(x_nchw, params, dilation=4, batch_block=None):
    B, C, H, W = x_nchw.shape
    assert H == W, "Modulator's avg_pool2d(kernel=H, stride=H) assumes H == W"
    HW = H * W
    Cr = params["cr_w"].shape[0]
    f32 = jnp.float32

    if batch_block is None:
        batch_block = _pick_batch_block(B, C, HW, x_nchw.dtype.itemsize)
    assert B % batch_block == 0
    L = batch_block * HW

    # channels-first + flattened spatial: a free reshape, no transposes.
    x = x_nchw.reshape(B, C, HW)
    masks = _make_tap_masks(H, W, dilation, batch_block)              # (9, L)

    # ---- pack the tiny parameters into 5 slabs ----
    cw = jnp.concatenate([params["cr_w"], params["fc1_w"]], axis=0).astype(f32)
    vec = jnp.concatenate([
        params["fc1_b"], params["bn1_s"], params["bn1_t"],
        params["cr_b"], params["bnr_s"], params["bnr_t"],
        params["d0_b"], params["bnd0_s"], params["bnd0_t"],
        params["d1_b"], params["bnd1_s"], params["bnd1_t"],
    ], axis=1).astype(f32)                                            # (Cr, 12)
    fc2 = jnp.concatenate([params["fc2_w"], params["fc2_b"]], axis=1).astype(f32)
    dw = jnp.concatenate([params["d0_w"], params["d1_w"]], axis=1).astype(f32)
    cf = jnp.concatenate([params["cf_w"], params["cf_b"]], axis=1).astype(f32)

    kernel = functools.partial(_modulator_kernel, H=H, W=W, C=C, Cr=Cr,
                               dilation=dilation, Bb=batch_block)

    def full_spec(p):
        return pl.BlockSpec(p.shape, lambda g: (0, 0))

    # VMEM budget: double-buffered in+out blocks + params, with margin.
    block_bytes = batch_block * C * HW * x_nchw.dtype.itemsize
    vmem_limit = int(min(64 << 20, max(16 << 20, 6 * block_bytes + (2 << 20))))

    out = pl.pallas_call(
        kernel,
        out_shape=jax.ShapeDtypeStruct((B, C, HW), x_nchw.dtype),
        grid=(B // batch_block,),
        in_specs=[pl.BlockSpec((batch_block, C, HW), lambda g: (g, 0, 0)),
                  full_spec(masks), full_spec(cw), full_spec(vec),
                  full_spec(fc2), full_spec(dw), full_spec(cf)],
        out_specs=pl.BlockSpec((batch_block, C, HW), lambda g: (g, 0, 0)),
        compiler_params=pltpu.CompilerParams(
            dimension_semantics=("parallel",),
            vmem_limit_bytes=vmem_limit),
    )(x, masks, cw, vec, fc2, dw, cf)

    return out.reshape(B, C, H, W)


# ---------------- pure-JAX reference (same math, XLA) ----------------
def modulator_ref(x_nchw, params, dilation=4):
    B, C, H, W = x_nchw.shape

    # channel attention
    avg = jnp.mean(x_nchw, axis=(2, 3))                               # (B, C)
    h = avg @ params["fc1_w"].T + params["fc1_b"][:, 0]               # (B, Cr)
    h = jnp.maximum(h * params["bn1_s"][:, 0] + params["bn1_t"][:, 0], 0.0)
    ch = h @ params["fc2_w"].T + params["fc2_b"][:, 0]                # (B, C)

    # spatial attention (conventional channels-last formulation)
    xc = jnp.transpose(x_nchw, (0, 2, 3, 1))                          # (B,H,W,C)
    s = xc @ params["cr_w"].T + params["cr_b"][:, 0]
    s = jnp.maximum(s * params["bnr_s"][:, 0] + params["bnr_t"][:, 0], 0.0)

    def dil_conv(a, w, b):
        Ci = a.shape[-1]
        Co = w.shape[0]
        p = dilation
        ap = jnp.pad(a, ((0, 0), (p, p), (p, p), (0, 0)))
        out = jnp.zeros(a.shape[:-1] + (Co,), jnp.float32) + b[:, 0]
        for tap in range(9):
            i, j = tap // 3, tap % 3
            sl = ap[:, i * p:i * p + H, j * p:j * p + W, :]           # (B,H,W,Ci)
            wt = w[:, tap * Ci:(tap + 1) * Ci]                        # (Co, Ci)
            out = out + sl @ wt.T
        return out

    s = jnp.maximum(dil_conv(s, params["d0_w"], params["d0_b"])
                    * params["bnd0_s"][:, 0] + params["bnd0_t"][:, 0], 0.0)
    s = jnp.maximum(dil_conv(s, params["d1_w"], params["d1_b"])
                    * params["bnd1_s"][:, 0] + params["bnd1_t"][:, 0], 0.0)
    sp = s @ params["cf_w"].T + params["cf_b"][0, 0]                  # (B,H,W,1)

    att = jax.nn.sigmoid(ch[:, None, None, :] * sp)
    return jnp.transpose(att * xc, (0, 3, 1, 2))


def init_params(key, C, reduction=16):
    Cr = max(C // reduction, 1)
    keys = iter(jax.random.split(key, 32))

    def nrm(shape, scale):
        return scale * jax.random.normal(next(keys), shape, dtype=jnp.float32)

    def bn(n):
        gamma = 1.0 + nrm((n,), 0.1)
        beta = nrm((n,), 0.1)
        mean = nrm((n,), 0.1)
        var = jnp.abs(nrm((n,), 0.5)) + 0.5
        s = gamma / jnp.sqrt(var + 1e-5)
        t = beta - mean * s
        return s.reshape(n, 1), t.reshape(n, 1)

    p = {}
    p["fc1_w"] = nrm((Cr, C), 0.2)        # Linear(C->Cr) weight, (out, in)
    p["fc1_b"] = nrm((Cr, 1), 0.1)
    p["bn1_s"], p["bn1_t"] = bn(Cr)
    p["fc2_w"] = nrm((C, Cr), 0.2)        # Linear(Cr->C) weight, (out, in)
    p["fc2_b"] = nrm((C, 1), 0.1)
    p["cr_w"] = nrm((Cr, C), 0.2)         # 1x1 conv reduce, (out, in)
    p["cr_b"] = nrm((Cr, 1), 0.1)
    p["bnr_s"], p["bnr_t"] = bn(Cr)
    p["d0_w"] = nrm((Cr, 9 * Cr), 0.2)    # dilated conv 0, column = tap*Cr + ic
    p["d0_b"] = nrm((Cr, 1), 0.1)
    p["bnd0_s"], p["bnd0_t"] = bn(Cr)
    p["d1_w"] = nrm((Cr, 9 * Cr), 0.2)    # dilated conv 1
    p["d1_b"] = nrm((Cr, 1), 0.1)
    p["bnd1_s"], p["bnd1_t"] = bn(Cr)
    p["cf_w"] = nrm((1, Cr), 0.2)         # 1x1 conv final (Cr -> 1)
    p["cf_b"] = nrm((1, 1), 0.1)
    return p


if __name__ == "__main__":
    key = jax.random.PRNGKey(0)
    kx, kp = jax.random.split(key)

    B, C, H, W = 2, 32, 16, 16            # gate_channel = 32 -> reduced = 2
    x = jax.random.normal(kx, (B, C, H, W), dtype=jnp.float32)
    params = init_params(kp, C)

    out = jax.block_until_ready(modulator_pallas(x, params))
    ref = modulator_ref(x, params)

    assert out.shape == x.shape
    np.testing.assert_allclose(np.asarray(out), np.asarray(ref),
                               atol=1e-4, rtol=1e-4)
    print("KERNEL_OK")
</pallas_src>

<mosaic_0001>
module attributes {stable_mosaic.version = 11 : i64} {
  func.func @_modulator_kernel(%arg0: i32, %arg1: memref<1x32x256xf32, #tpu.memory_space<vmem>>, %arg2: memref<9x256xf32, #tpu.memory_space<vmem>>, %arg3: memref<4x32xf32, #tpu.memory_space<vmem>>, %arg4: memref<2x12xf32, #tpu.memory_space<vmem>>, %arg5: memref<32x3xf32, #tpu.memory_space<vmem>>, %arg6: memref<2x36xf32, #tpu.memory_space<vmem>>, %arg7: memref<1x3xf32, #tpu.memory_space<vmem>>, %arg8: memref<1x32x256xf32, #tpu.memory_space<vmem>>) attributes {dimension_semantics = [#tpu.dimension_semantics<parallel>], iteration_bounds = array<i64: 2>, scalar_prefetch = 0 : i64, scratch_operands = 0 : i64, tpu.core_type = #tpu.core_type<tc>, window_params = [{transform_indices = @transform_0, window_bounds = array<i64: 1, 32, 256>}, {pipeline_mode = #tpu.pipeline_mode<synchronous>, transform_indices = @transform_1, window_bounds = array<i64: 9, 256>}, {pipeline_mode = #tpu.pipeline_mode<synchronous>, transform_indices = @transform_2, window_bounds = array<i64: 4, 32>}, {pipeline_mode = #tpu.pipeline_mode<synchronous>, transform_indices = @transform_3, window_bounds = array<i64: 2, 12>}, {pipeline_mode = #tpu.pipeline_mode<synchronous>, transform_indices = @transform_4, window_bounds = array<i64: 32, 3>}, {pipeline_mode = #tpu.pipeline_mode<synchronous>, transform_indices = @transform_5, window_bounds = array<i64: 2, 36>}, {pipeline_mode = #tpu.pipeline_mode<synchronous>, transform_indices = @transform_6, window_bounds = array<i64: 1, 3>}, {transform_indices = @transform_7, window_bounds = array<i64: 1, 32, 256>}]} {
    %c0 = arith.constant 0 : index
    %c0_0 = arith.constant 0 : index
    %0 = vector.load %arg4[%c0, %c0_0] : memref<2x12xf32, #tpu.memory_space<vmem>>, vector<2x12xf32>
    %1 = vector.extract_strided_slice %0 {offsets = [0, 0], sizes = [2, 1], strides = [1, 1]} : vector<2x12xf32> to vector<2x1xf32>
    %2 = vector.extract_strided_slice %0 {offsets = [0, 1], sizes = [2, 1], strides = [1, 1]} : vector<2x12xf32> to vector<2x1xf32>
    %3 = vector.extract_strided_slice %0 {offsets = [0, 2], sizes = [2, 1], strides = [1, 1]} : vector<2x12xf32> to vector<2x1xf32>
    %4 = vector.extract_strided_slice %0 {offsets = [0, 3], sizes = [2, 1], strides = [1, 1]} : vector<2x12xf32> to vector<2x1xf32>
    %5 = vector.extract_strided_slice %0 {offsets = [0, 4], sizes = [2, 1], strides = [1, 1]} : vector<2x12xf32> to vector<2x1xf32>
    %6 = vector.extract_strided_slice %0 {offsets = [0, 5], sizes = [2, 1], strides = [1, 1]} : vector<2x12xf32> to vector<2x1xf32>
    %7 = vector.extract_strided_slice %0 {offsets = [0, 6], sizes = [2, 1], strides = [1, 1]} : vector<2x12xf32> to vector<2x1xf32>
    %8 = vector.extract_strided_slice %0 {offsets = [0, 7], sizes = [2, 1], strides = [1, 1]} : vector<2x12xf32> to vector<2x1xf32>
    %9 = vector.extract_strided_slice %0 {offsets = [0, 8], sizes = [2, 1], strides = [1, 1]} : vector<2x12xf32> to vector<2x1xf32>
    %10 = vector.extract_strided_slice %0 {offsets = [0, 9], sizes = [2, 1], strides = [1, 1]} : vector<2x12xf32> to vector<2x1xf32>
    %11 = vector.extract_strided_slice %0 {offsets = [0, 10], sizes = [2, 1], strides = [1, 1]} : vector<2x12xf32> to vector<2x1xf32>
    %12 = vector.extract_strided_slice %0 {offsets = [0, 11], sizes = [2, 1], strides = [1, 1]} : vector<2x12xf32> to vector<2x1xf32>
    %c0_1 = arith.constant 0 : index
    %c0_2 = arith.constant 0 : index
    %13 = vector.load %arg3[%c0_1, %c0_2] : memref<4x32xf32, #tpu.memory_space<vmem>>, vector<4x32xf32>
    %c0_3 = arith.constant 0 : index
    %c0_4 = arith.constant 0 : index
    %14 = vector.load %arg5[%c0_3, %c0_4] : memref<32x3xf32, #tpu.memory_space<vmem>>, vector<32x2xf32>
    %c0_5 = arith.constant 0 : index
    %c2 = arith.constant 2 : index
    %15 = vector.load %arg5[%c0_5, %c2] : memref<32x3xf32, #tpu.memory_space<vmem>>, vector<32x1xf32>
    %c0_6 = arith.constant 0 : index
    %c0_7 = arith.constant 0 : index
    %16 = vector.load %arg6[%c0_6, %c0_7] : memref<2x36xf32, #tpu.memory_space<vmem>>, vector<2x18xf32>
    %c0_8 = arith.constant 0 : index
    %c18 = arith.constant 18 : index
    %17 = vector.load %arg6[%c0_8, %c18] : memref<2x36xf32, #tpu.memory_space<vmem>>, vector<2x18xf32>
    %c0_9 = arith.constant 0 : index
    %c0_10 = arith.constant 0 : index
    %18 = vector.load %arg7[%c0_9, %c0_10] : memref<1x3xf32, #tpu.memory_space<vmem>>, vector<1x2xf32>
    %c0_11 = arith.constant 0 : index
    %c2_12 = arith.constant 2 : index
    %19 = vector.load %arg7[%c0_11, %c2_12] : memref<1x3xf32, #tpu.memory_space<vmem>>, vector<1x1xf32>
    %c0_13 = arith.constant 0 : index
    %c0_14 = arith.constant 0 : index
    %20 = vector.load %arg2[%c0_13, %c0_14] : memref<9x256xf32, #tpu.memory_space<vmem>>, vector<9x256xf32>
    %c0_15 = arith.constant 0 : index
    %c0_16 = arith.constant 0 : index
    %c0_17 = arith.constant 0 : index
    %21 = vector.load %arg1[%c0_15, %c0_16, %c0_17] : memref<1x32x256xf32, #tpu.memory_space<vmem>>, vector<1x32x256xf32>
    %22 = vector.shape_cast %21 : vector<1x32x256xf32> to vector<32x256xf32>
    %cst = arith.constant dense<0.000000e+00> : vector<4x256xf32>
    %23 = tpu.matmul %13, %22, %cst {dimension_numbers = #tpu.dot_dimension_numbers<[1], [0], [0], [1], [0, 0, 1, 1], [], []>} : vector<4x32xf32>, vector<32x256xf32>, vector<4x256xf32> -> vector<4x256xf32>
    %24 = vector.extract_strided_slice %23 {offsets = [0, 0], sizes = [2, 256], strides = [1, 1]} : vector<4x256xf32> to vector<2x256xf32>
    %25 = vector.extract_strided_slice %23 {offsets = [2, 0], sizes = [2, 256], strides = [1, 1]} : vector<4x256xf32> to vector<2x256xf32>
    %cst_18 = arith.constant dense<0.000000e+00> : vector<2xf32>
    %26 = vector.multi_reduction <add>, %25, %cst_18 [1] : vector<2x256xf32> to vector<2xf32>
    %27 = vector.shape_cast %26 : vector<2xf32> to vector<2x1xf32>
    %cst_19 = arith.constant 2.560000e+02 : f32
    %28 = vector.broadcast %cst_19 : f32 to vector<2x1xf32>
    %29 = arith.divf %27, %28 : vector<2x1xf32>
    %30 = arith.addf %29, %1 : vector<2x1xf32>
    %31 = arith.mulf %30, %2 : vector<2x1xf32>
    %32 = arith.addf %31, %3 : vector<2x1xf32>
    %cst_20 = arith.constant 0.000000e+00 : f32
    %33 = vector.broadcast %cst_20 : f32 to vector<2x1xf32>
    %34 = arith.maximumf %32, %33 : vector<2x1xf32>
    %35 = vector.extract_strided_slice %14 {offsets = [0, 0], sizes = [32, 1], strides = [1, 1]} : vector<32x2xf32> to vector<32x1xf32>
    %36 = vector.extract_strided_slice %34 {offsets = [0, 0], sizes = [1, 1], strides = [1, 1]} : vector<2x1xf32> to vector<1x1xf32>
    %37 = vector.broadcast %36 : vector<1x1xf32> to vector<32x1xf32>
    %38 = arith.mulf %35, %37 : vector<32x1xf32>
    %39 = arith.addf %15, %38 : vector<32x1xf32>
    %40 = vector.extract_strided_slice %14 {offsets = [0, 1], sizes = [32, 1], strides = [1, 1]} : vector<32x2xf32> to vector<32x1xf32>
    %41 = vector.extract_strided_slice %34 {offsets = [1, 0], sizes = [1, 1], strides = [1, 1]} : vector<2x1xf32> to vector<1x1xf32>
    %42 = vector.broadcast %41 : vector<1x1xf32> to vector<32x1xf32>
    %43 = arith.mulf %40, %42 : vector<32x1xf32>
    %44 = arith.addf %39, %43 : vector<32x1xf32>
    %45 = vector.broadcast %4 : vector<2x1xf32> to vector<2x256xf32>
    %46 = arith.addf %24, %45 : vector<2x256xf32>
    %47 = vector.broadcast %5 : vector<2x1xf32> to vector<2x256xf32>
    %48 = arith.mulf %46, %47 : vector<2x256xf32>
    %49 = vector.broadcast %6 : vector<2x1xf32> to vector<2x256xf32>
    %50 = arith.addf %48, %49 : vector<2x256xf32>
    %cst_21 = arith.constant 0.000000e+00 : f32
    %51 = vector.broadcast %cst_21 : f32 to vector<2x256xf32>
    %52 = arith.maximumf %50, %51 : vector<2x256xf32>
    %c68_i32 = arith.constant 68 : i32
    %53 = tpu.dynamic_rotate %52 by %c68_i32 dim 1 : vector<2x256xf32>, i32 -> vector<2x256xf32>
    %54 = vector.extract_strided_slice %20 {offsets = [0, 0], sizes = [1, 256], strides = [1, 1]} : vector<9x256xf32> to vector<1x256xf32>
    %55 = vector.broadcast %54 : vector<1x256xf32> to vector<2x256xf32>
    %56 = arith.mulf %53, %55 : vector<2x256xf32>
    %c64_i32 = arith.constant 64 : i32
    %57 = tpu.dynamic_rotate %52 by %c64_i32 dim 1 : vector<2x256xf32>, i32 -> vector<2x256xf32>
    %58 = vector.extract_strided_slice %20 {offsets = [1, 0], sizes = [1, 256], strides = [1, 1]} : vector<9x256xf32> to vector<1x256xf32>
    %59 = vector.broadcast %58 : vector<1x256xf32> to vector<2x256xf32>
    %60 = arith.mulf %57, %59 : vector<2x256xf32>
    %c60_i32 = arith.constant 60 : i32
    %61 = tpu.dynamic_rotate %52 by %c60_i32 dim 1 : vector<2x256xf32>, i32 -> vector<2x256xf32>
    %62 = vector.extract_strided_slice %20 {offsets = [2, 0], sizes = [1, 256], strides = [1, 1]} : vector<9x256xf32> to vector<1x256xf32>
    %63 = vector.broadcast %62 : vector<1x256xf32> to vector<2x256xf32>
    %64 = arith.mulf %61, %63 : vector<2x256xf32>
    %c4_i32 = arith.constant 4 : i32
    %65 = tpu.dynamic_rotate %52 by %c4_i32 dim 1 : vector<2x256xf32>, i32 -> vector<2x256xf32>
    %66 = vector.extract_strided_slice %20 {offsets = [3, 0], sizes = [1, 256], strides = [1, 1]} : vector<9x256xf32> to vector<1x256xf32>
    %67 = vector.broadcast %66 : vector<1x256xf32> to vector<2x256xf32>
    %68 = arith.mulf %65, %67 : vector<2x256xf32>
    %69 = vector.extract_strided_slice %20 {offsets = [4, 0], sizes = [1, 256], strides = [1, 1]} : vector<9x256xf32> to vector<1x256xf32>
    %70 = vector.broadcast %69 : vector<1x256xf32> to vector<2x256xf32>
    %71 = arith.mulf %52, %70 : vector<2x256xf32>
    %c252_i32 = arith.constant 252 : i32
    %72 = tpu.dynamic_rotate %52 by %c252_i32 dim 1 : vector<2x256xf32>, i32 -> vector<2x256xf32>
    %73 = vector.extract_strided_slice %20 {offsets = [5, 0], sizes = [1, 256], strides = [1, 1]} : vector<9x256xf32> to vector<1x256xf32>
    %74 = vector.broadcast %73 : vector<1x256xf32> to vector<2x256xf32>
    %75 = arith.mulf %72, %74 : vector<2x256xf32>
    %c196_i32 = arith.constant 196 : i32
    %76 = tpu.dynamic_rotate %52 by %c196_i32 dim 1 : vector<2x256xf32>, i32 -> vector<2x256xf32>
    %77 = vector.extract_strided_slice %20 {offsets = [6, 0], sizes = [1, 256], strides = [1, 1]} : vector<9x256xf32> to vector<1x256xf32>
    %78 = vector.broadcast %77 : vector<1x256xf32> to vector<2x256xf32>
    %79 = arith.mulf %76, %78 : vector<2x256xf32>
    %c192_i32 = arith.constant 192 : i32
    %80 = tpu.dynamic_rotate %52 by %c192_i32 dim 1 : vector<2x256xf32>, i32 -> vector<2x256xf32>
    %81 = vector.extract_strided_slice %20 {offsets = [7, 0], sizes = [1, 256], strides = [1, 1]} : vector<9x256xf32> to vector<1x256xf32>
    %82 = vector.broadcast %81 : vector<1x256xf32> to vector<2x256xf32>
    %83 = arith.mulf %80, %82 : vector<2x256xf32>
    %c188_i32 = arith.constant 188 : i32
    %84 = tpu.dynamic_rotate %52 by %c188_i32 dim 1 : vector<2x256xf32>, i32 -> vector<2x256xf32>
    %85 = vector.extract_strided_slice %20 {offsets = [8, 0], sizes = [1, 256], strides = [1, 1]} : vector<9x256xf32> to vector<1x256xf32>
    %86 = vector.broadcast %85 : vector<1x256xf32> to vector<2x256xf32>
    %87 = arith.mulf %84, %86 : vector<2x256xf32>
    %88 = tpu.concatenate %56, %60, %64, %68, %71, %75, %79, %83, %87 in 0 : vector<2x256xf32>, vector<2x256xf32>, vector<2x256xf32>, vector<2x256xf32>, vector<2x256xf32>, vector<2x256xf32>, vector<2x256xf32>, vector<2x256xf32>, vector<2x256xf32> -> vector<18x256xf32>
    %cst_22 = arith.constant dense<0.000000e+00> : vector<2x256xf32>
    %89 = tpu.matmul %16, %88, %cst_22 {dimension_numbers = #tpu.dot_dimension_numbers<[1], [0], [0], [1], [0, 0, 1, 1], [], []>} : vector<2x18xf32>, vector<18x256xf32>, vector<2x256xf32> -> vector<2x256xf32>
    %90 = vector.broadcast %7 : vector<2x1xf32> to vector<2x256xf32>
    %91 = arith.addf %89, %90 : vector<2x256xf32>
    %92 = vector.broadcast %8 : vector<2x1xf32> to vector<2x256xf32>
    %93 = arith.mulf %91, %92 : vector<2x256xf32>
    %94 = vector.broadcast %9 : vector<2x1xf32> to vector<2x256xf32>
    %95 = arith.addf %93, %94 : vector<2x256xf32>
    %cst_23 = arith.constant 0.000000e+00 : f32
    %96 = vector.broadcast %cst_23 : f32 to vector<2x256xf32>
    %97 = arith.maximumf %95, %96 : vector<2x256xf32>
    %c68_i32_24 = arith.constant 68 : i32
    %98 = tpu.dynamic_rotate %97 by %c68_i32_24 dim 1 : vector<2x256xf32>, i32 -> vector<2x256xf32>
    %99 = vector.extract_strided_slice %20 {offsets = [0, 0], sizes = [1, 256], strides = [1, 1]} : vector<9x256xf32> to vector<1x256xf32>
    %100 = vector.broadcast %99 : vector<1x256xf32> to vector<2x256xf32>
    %101 = arith.mulf %98, %100 : vector<2x256xf32>
    %c64_i32_25 = arith.constant 64 : i32
    %102 = tpu.dynamic_rotate %97 by %c64_i32_25 dim 1 : vector<2x256xf32>, i32 -> vector<2x256xf32>
    %103 = vector.extract_strided_slice %20 {offsets = [1, 0], sizes = [1, 256], strides = [1, 1]} : vector<9x256xf32> to vector<1x256xf32>
    %104 = vector.broadcast %103 : vector<1x256xf32> to vector<2x256xf32>
    %105 = arith.mulf %102, %104 : vector<2x256xf32>
    %c60_i32_26 = arith.constant 60 : i32
    %106 = tpu.dynamic_rotate %97 by %c60_i32_26 dim 1 : vector<2x256xf32>, i32 -> vector<2x256xf32>
    %107 = vector.extract_strided_slice %20 {offsets = [2, 0], sizes = [1, 256], strides = [1, 1]} : vector<9x256xf32> to vector<1x256xf32>
    %108 = vector.broadcast %107 : vector<1x256xf32> to vector<2x256xf32>
    %109 = arith.mulf %106, %108 : vector<2x256xf32>
    %c4_i32_27 = arith.constant 4 : i32
    %110 = tpu.dynamic_rotate %97 by %c4_i32_27 dim 1 : vector<2x256xf32>, i32 -> vector<2x256xf32>
    %111 = vector.extract_strided_slice %20 {offsets = [3, 0], sizes = [1, 256], strides = [1, 1]} : vector<9x256xf32> to vector<1x256xf32>
    %112 = vector.broadcast %111 : vector<1x256xf32> to vector<2x256xf32>
    %113 = arith.mulf %110, %112 : vector<2x256xf32>
    %114 = vector.extract_strided_slice %20 {offsets = [4, 0], sizes = [1, 256], strides = [1, 1]} : vector<9x256xf32> to vector<1x256xf32>
    %115 = vector.broadcast %114 : vector<1x256xf32> to vector<2x256xf32>
    %116 = arith.mulf %97, %115 : vector<2x256xf32>
    %c252_i32_28 = arith.constant 252 : i32
    %117 = tpu.dynamic_rotate %97 by %c252_i32_28 dim 1 : vector<2x256xf32>, i32 -> vector<2x256xf32>
    %118 = vector.extract_strided_slice %20 {offsets = [5, 0], sizes = [1, 256], strides = [1, 1]} : vector<9x256xf32> to vector<1x256xf32>
    %119 = vector.broadcast %118 : vector<1x256xf32> to vector<2x256xf32>
    %120 = arith.mulf %117, %119 : vector<2x256xf32>
    %c196_i32_29 = arith.constant 196 : i32
    %121 = tpu.dynamic_rotate %97 by %c196_i32_29 dim 1 : vector<2x256xf32>, i32 -> vector<2x256xf32>
    %122 = vector.extract_strided_slice %20 {offsets = [6, 0], sizes = [1, 256], strides = [1, 1]} : vector<9x256xf32> to vector<1x256xf32>
    %123 = vector.broadcast %122 : vector<1x256xf32> to vector<2x256xf32>
    %124 = arith.mulf %121, %123 : vector<2x256xf32>
    %c192_i32_30 = arith.constant 192 : i32
    %125 = tpu.dynamic_rotate %97 by %c192_i32_30 dim 1 : vector<2x256xf32>, i32 -> vector<2x256xf32>
    %126 = vector.extract_strided_slice %20 {offsets = [7, 0], sizes = [1, 256], strides = [1, 1]} : vector<9x256xf32> to vector<1x256xf32>
    %127 = vector.broadcast %126 : vector<1x256xf32> to vector<2x256xf32>
    %128 = arith.mulf %125, %127 : vector<2x256xf32>
    %c188_i32_31 = arith.constant 188 : i32
    %129 = tpu.dynamic_rotate %97 by %c188_i32_31 dim 1 : vector<2x256xf32>, i32 -> vector<2x256xf32>
    %130 = vector.extract_strided_slice %20 {offsets = [8, 0], sizes = [1, 256], strides = [1, 1]} : vector<9x256xf32> to vector<1x256xf32>
    %131 = vector.broadcast %130 : vector<1x256xf32> to vector<2x256xf32>
    %132 = arith.mulf %129, %131 : vector<2x256xf32>
    %133 = tpu.concatenate %101, %105, %109, %113, %116, %120, %124, %128, %132 in 0 : vector<2x256xf32>, vector<2x256xf32>, vector<2x256xf32>, vector<2x256xf32>, vector<2x256xf32>, vector<2x256xf32>, vector<2x256xf32>, vector<2x256xf32>, vector<2x256xf32> -> vector<18x256xf32>
    %cst_32 = arith.constant dense<0.000000e+00> : vector<2x256xf32>
    %134 = tpu.matmul %17, %133, %cst_32 {dimension_numbers = #tpu.dot_dimension_numbers<[1], [0], [0], [1], [0, 0, 1, 1], [], []>} : vector<2x18xf32>, vector<18x256xf32>, vector<2x256xf32> -> vector<2x256xf32>
    %135 = vector.broadcast %10 : vector<2x1xf32> to vector<2x256xf32>
    %136 = arith.addf %134, %135 : vector<2x256xf32>
    %137 = vector.broadcast %11 : vector<2x1xf32> to vector<2x256xf32>
    %138 = arith.mulf %136, %137 : vector<2x256xf32>
    %139 = vector.broadcast %12 : vector<2x1xf32> to vector<2x256xf32>
    %140 = arith.addf %138, %139 : vector<2x256xf32>
    %cst_33 = arith.constant 0.000000e+00 : f32
    %141 = vector.broadcast %cst_33 : f32 to vector<2x256xf32>
    %142 = arith.maximumf %140, %141 : vector<2x256xf32>
    %143 = vector.extract_strided_slice %18 {offsets = [0, 0], sizes = [1, 1], strides = [1, 1]} : vector<1x2xf32> to vector<1x1xf32>
    %144 = vector.extract_strided_slice %142 {offsets = [0, 0], sizes = [1, 256], strides = [1, 1]} : vector<2x256xf32> to vector<1x256xf32>
    %145 = vector.broadcast %143 : vector<1x1xf32> to vector<1x256xf32>
    %146 = arith.mulf %145, %144 : vector<1x256xf32>
    %147 = vector.broadcast %19 : vector<1x1xf32> to vector<1x256xf32>
    %148 = arith.addf %147, %146 : vector<1x256xf32>
    %149 = vector.extract_strided_slice %18 {offsets = [0, 1], sizes = [1, 1], strides = [1, 1]} : vector<1x2xf32> to vector<1x1xf32>
    %150 = vector.extract_strided_slice %142 {offsets = [1, 0], sizes = [1, 256], strides = [1, 1]} : vector<2x256xf32> to vector<1x256xf32>
    %151 = vector.broadcast %149 : vector<1x1xf32> to vector<1x256xf32>
    %152 = arith.mulf %151, %150 : vector<1x256xf32>
    %153 = arith.addf %148, %152 : vector<1x256xf32>
    %154 = vector.broadcast %44 : vector<32x1xf32> to vector<32x256xf32>
    %155 = vector.broadcast %153 : vector<1x256xf32> to vector<32x256xf32>
    %156 = arith.mulf %154, %155 : vector<32x256xf32>
    %cst_34 = arith.constant 5.000000e-01 : f32
    %157 = vector.broadcast %cst_34 : f32 to vector<32x256xf32>
    %158 = arith.mulf %157, %156 : vector<32x256xf32>
    %159 = math.tanh %158 : vector<32x256xf32>
    %cst_35 = arith.constant 5.000000e-01 : f32
    %160 = vector.broadcast %cst_35 : f32 to vector<32x256xf32>
    %161 = arith.mulf %160, %159 : vector<32x256xf32>
    %cst_36 = arith.constant 5.000000e-01 : f32
    %162 = vector.broadcast %cst_36 : f32 to vector<32x256xf32>
    %163 = arith.addf %161, %162 : vector<32x256xf32>
    %164 = arith.mulf %163, %22 : vector<32x256xf32>
    %c0_37 = arith.constant 0 : index
    %c0_38 = arith.constant 0 : index
    %c0_39 = arith.constant 0 : index
    %165 = vector.load %arg8[%c0_37, %c0_38, %c0_39] : memref<1x32x256xf32, #tpu.memory_space<vmem>>, vector<1x32x256xf32>
    %166 = vector.shape_cast %165 : vector<1x32x256xf32> to vector<32x256xf32>
    %167 = vector.shape_cast %164 : vector<32x256xf32> to vector<1x32x256xf32>
    tpu.vector_store %arg8[%c0_37, %c0_38, %c0_39], %167 {strides = array<i32>} : memref<1x32x256xf32, #tpu.memory_space<vmem>>, vector<1x32x256xf32>,
    return
  }
  func.func @transform_0(%arg0: i32) -> (i32, i32, i32) {
    %c0_i32 = arith.constant 0 : i32
    %c0_i32_0 = arith.constant 0 : i32
    %c0_i32_1 = arith.constant 0 : i32
    return %arg0, %c0_i32, %c0_i32_0 : i32, i32, i32
  }
  func.func @transform_1(%arg0: i32) -> (i32, i32) {
    %c0_i32 = arith.constant 0 : i32
    %c0_i32_0 = arith.constant 0 : i32
    %c0_i32_1 = arith.constant 0 : i32
    return %c0_i32, %c0_i32_0 : i32, i32
  }
  func.func @transform_2(%arg0: i32) -> (i32, i32) {
    %c0_i32 = arith.constant 0 : i32
    %c0_i32_0 = arith.constant 0 : i32
    %c0_i32_1 = arith.constant 0 : i32
    return %c0_i32, %c0_i32_0 : i32, i32
  }
  func.func @transform_3(%arg0: i32) -> (i32, i32) {
    %c0_i32 = arith.constant 0 : i32
    %c0_i32_0 = arith.constant 0 : i32
    %c0_i32_1 = arith.constant 0 : i32
    return %c0_i32, %c0_i32_0 : i32, i32
  }
  func.func @transform_4(%arg0: i32) -> (i32, i32) {
    %c0_i32 = arith.constant 0 : i32
    %c0_i32_0 = arith.constant 0 : i32
    %c0_i32_1 = arith.constant 0 : i32
    return %c0_i32, %c0_i32_0 : i32, i32
  }
  func.func @transform_5(%arg0: i32) -> (i32, i32) {
    %c0_i32 = arith.constant 0 : i32
    %c0_i32_0 = arith.constant 0 : i32
    %c0_i32_1 = arith.constant 0 : i32
    return %c0_i32, %c0_i32_0 : i32, i32
  }
  func.func @transform_6(%arg0: i32) -> (i32, i32) {
    %c0_i32 = arith.constant 0 : i32
    %c0_i32_0 = arith.constant 0 : i32
    %c0_i32_1 = arith.constant 0 : i32
    return %c0_i32, %c0_i32_0 : i32, i32
  }
  func.func @transform_7(%arg0: i32) -> (i32, i32, i32) {
    %c0_i32 = arith.constant 0 : i32
    %c0_i32_0 = arith.constant 0 : i32
    %c0_i32_1 = arith.constant 0 : i32
    return %arg0, %c0_i32, %c0_i32_0 : i32, i32, i32
  }
}

</mosaic_0001>

<llo_original>
// kernel: tpu_custom_call.1
$region0: #{tpu_custom_call.1}
  #allocation0 [shape = 'u32[]', space=smem, size = 0x4, offset = 0x4, fixed_abs, tag = 'smem constant byte address 0x4 - core index']
  #allocation1 [shape = 'u32[144,128]{1,0:T(1,128)}', space=vmem, size = 0x12000, scoped, tag = 'internal scratch']
  %s0 = inlined_call_operand.hbm [shape: f32[2,32,256], index: 0, kind: input, shape index: {}]
  %s1 = inlined_call_operand.vmem [shape: f32[9,256], index: 1, kind: input, shape index: {}]
  %s2 = inlined_call_operand.vmem [shape: f32[4,32], index: 2, kind: input, shape index: {}]
  %s3 = inlined_call_operand.vmem [shape: f32[2,12], index: 3, kind: input, shape index: {}]
  %s4 = inlined_call_operand.vmem [shape: f32[32,3], index: 4, kind: input, shape index: {}]
  %s5 = inlined_call_operand.vmem [shape: f32[2,36], index: 5, kind: input, shape index: {}]
  %s6 = inlined_call_operand.vmem [shape: f32[1,3], index: 6, kind: input, shape index: {}]
  %s7 = inlined_call_operand.hbm [shape: f32[2,32,256], index: 7, kind: output, shape index: {}]
  %s8 = sld [smem:[#allocation0]]
  $region65: #{tpu_custom_call.1} parent=0
    _
  %s10 = ssub.s32 1, %s8
  %s11 = scalar_select 0, %s10, %s8
  $region1: #{tpu_custom_call.1} parent=0
    #allocation2 [shape = 'u8[65536]{0}', space=vmem, size = 0x10000, scoped, tag = 'input window, operand 0']
    #allocation3 [shape = 's32[2]{0}', space=sflag, size = 0x8, scoped, tag = 'scoped memory for tpu_custom_call.1']
    #allocation4 [shape = 's32[2]{0}', space=sflag, size = 0x8, scoped, tag = 'scoped memory for tpu_custom_call.1']
    #allocation5 [shape = 'u8[65536]{0}', space=vmem, size = 0x10000, scoped, tag = 'output window, operand 0']
    %12 = vsyncpa [#allocation3], 0
    %s13 = scalar_lea.sflag [#allocation3], 1
    %14 = vsyncpa %s13, 0
    %15 = vsyncpa [#allocation4], 0
    %s16 = scalar_lea.sflag [#allocation4], 1
    %17 = vsyncpa %s16, 0
    loop: start=0, step=1, limit=4
    $region2: #{tpu_custom_call.1} parent=1 // loop_pre_header
      _
    $region3: #{tpu_custom_call.1} parent=1 // loop_header
      %s19 = sphi 0, %s23
      %p20 = scmp.ge.s32.totalorder %s19, 4
      %s29 = sphi 0, %s31
      %s32 = sphi 0, %s29
      %s33 = sphi 0, %s32
      %s49 = sphi 0, %s33
      %s53 = sphi 0, %s53
      %s55 = sphi 0, %s53
      %s56 = sphi 0, %s55
      %s70 = sphi 0, %s56
      %s74 = sphi 0, %s74
      %s76 = sphi 0, %s74
      %s77 = sphi 0, %s76
      %s91 = sphi 0, %s77
      %s95 = sphi 0, %s95
      %s97 = sphi 0, %s95
      %s98 = sphi 0, %s97
      %s112 = sphi 0, %s98
      %s116 = sphi 0, %s116
      %s118 = sphi 0, %s116
      %s119 = sphi 0, %s118
      %s133 = sphi 0, %s119
      %s137 = sphi 0, %s137
      %s139 = sphi 0, %s137
      %s140 = sphi 0, %s139
      %s154 = sphi 0, %s140
      %s158 = sphi 0, %s158
      %s160 = sphi 0, %s158
      %s161 = sphi 0, %s160
      %s175 = sphi 0, %s161
      %s181 = sphi 0, %s183
      %s184 = sphi 0, %s181
      %s185 = sphi 0, %s184
      %s201 = sphi 0, %s185
    $region4: #{tpu_custom_call.1} parent=1 // loop_header_branch
      %22 = sbr.rel (%p20) target = $region8
    $region5: #{tpu_custom_call.1} parent=1 // loop_body
      %s24 = ssub.s32 %s19, 1
      %s25 = ssub.s32 %s19, 2
      %s26 = sadd.s32 %s19, 1
      %s27 = ssub.s32 %s19, %s26
      %p28 = scmp.eq.s32.totalorder %s27, 0
      %s30 = sadd.s32 %s29, 1
      %s31 = scalar_select %p28, %s29, %s30
      %p34 = pneg %p28
      %p35 = scmp.eq.s32.totalorder %s19, 1
      %p36 = por %p34, %p35
      %p37 = scmp.ne.s32.totalorder %s29, %s32
      %p38 = scmp.eq.s32.totalorder %s19, 0
      %p39 = por %p37, %p38
      %p40 = scmp.ne.s32.totalorder %s29, %s32
      %p41 = scmp.eq.s32.totalorder %s24, 1
      %p42 = por %p40, %p41
      %p43 = scmp.ne.s32.totalorder %s32, %s33
      %p44 = scmp.eq.s32.totalorder %s24, 0
      %p45 = por %p43, %p44
      %p46 = scmp.ne.s32.totalorder %s32, %s33
      %p47 = scmp.eq.s32.totalorder %s25, 1
      %p48 = por %p46, %p47
      %p50 = scmp.ne.s32.totalorder %s33, %s49
      %p51 = scmp.eq.s32.totalorder %s25, 0
      %p52 = por %p50, %p51
      %s54 = sadd.s32 %s53, 1
      %p57 = scmp.eq.s32.totalorder %s19, 1
      %p58 = scmp.ne.s32.totalorder %s53, %s55
      %p59 = scmp.eq.s32.totalorder %s19, 0
      %p60 = por %p58, %p59
      %p61 = scmp.ne.s32.totalorder %s53, %s55
      %p62 = scmp.eq.s32.totalorder %s24, 1
      %p63 = por %p61, %p62
      %p64 = scmp.ne.s32.totalorder %s55, %s56
      %p65 = scmp.eq.s32.totalorder %s24, 0
      %p66 = por %p64, %p65
      %p67 = scmp.ne.s32.totalorder %s55, %s56
      %p68 = scmp.eq.s32.totalorder %s25, 1
      %p69 = por %p67, %p68
      %p71 = scmp.ne.s32.totalorder %s56, %s70
      %p72 = scmp.eq.s32.totalorder %s25, 0
      %p73 = por %p71, %p72
      %s75 = sadd.s32 %s74, 1
      %p78 = scmp.eq.s32.totalorder %s19, 1
      %p79 = scmp.ne.s32.totalorder %s74, %s76
      %p80 = scmp.eq.s32.totalorder %s19, 0
      %p81 = por %p79, %p80
      %p82 = scmp.ne.s32.totalorder %s74, %s76
      %p83 = scmp.eq.s32.totalorder %s24, 1
      %p84 = por %p82, %p83
      %p85 = scmp.ne.s32.totalorder %s76, %s77
      %p86 = scmp.eq.s32.totalorder %s24, 0
      %p87 = por %p85, %p86
      %p88 = scmp.ne.s32.totalorder %s76, %s77
      %p89 = scmp.eq.s32.totalorder %s25, 1
      %p90 = por %p88, %p89
      %p92 = scmp.ne.s32.totalorder %s77, %s91
      %p93 = scmp.eq.s32.totalorder %s25, 0
      %p94 = por %p92, %p93
      %s96 = sadd.s32 %s95, 1
      %p99 = scmp.eq.s32.totalorder %s19, 1
      %p100 = scmp.ne.s32.totalorder %s95, %s97
      %p101 = scmp.eq.s32.totalorder %s19, 0
      %p102 = por %p100, %p101
      %p103 = scmp.ne.s32.totalorder %s95, %s97
      %p104 = scmp.eq.s32.totalorder %s24, 1
      %p105 = por %p103, %p104
      %p106 = scmp.ne.s32.totalorder %s97, %s98
      %p107 = scmp.eq.s32.totalorder %s24, 0
      %p108 = por %p106, %p107
      %p109 = scmp.ne.s32.totalorder %s97, %s98
      %p110 = scmp.eq.s32.totalorder %s25, 1
      %p111 = por %p109, %p110
      %p113 = scmp.ne.s32.totalorder %s98, %s112
      %p114 = scmp.eq.s32.totalorder %s25, 0
      %p115 = por %p113, %p114
      %s117 = sadd.s32 %s116, 1
      %p120 = scmp.eq.s32.totalorder %s19, 1
      %p121 = scmp.ne.s32.totalorder %s116, %s118
      %p122 = scmp.eq.s32.totalorder %s19, 0
      %p123 = por %p121, %p122
      %p124 = scmp.ne.s32.totalorder %s116, %s118
      %p125 = scmp.eq.s32.totalorder %s24, 1
      %p126 = por %p124, %p125
      %p127 = scmp.ne.s32.totalorder %s118, %s119
      %p128 = scmp.eq.s32.totalorder %s24, 0
      %p129 = por %p127, %p128
      %p130 = scmp.ne.s32.totalorder %s118, %s119
      %p131 = scmp.eq.s32.totalorder %s25, 1
      %p132 = por %p130, %p131
      %p134 = scmp.ne.s32.totalorder %s119, %s133
      %p135 = scmp.eq.s32.totalorder %s25, 0
      %p136 = por %p134, %p135
      %s138 = sadd.s32 %s137, 1
      %p141 = scmp.eq.s32.totalorder %s19, 1
      %p142 = scmp.ne.s32.totalorder %s137, %s139
      %p143 = scmp.eq.s32.totalorder %s19, 0
      %p144 = por %p142, %p143
      %p145 = scmp.ne.s32.totalorder %s137, %s139
      %p146 = scmp.eq.s32.totalorder %s24, 1
      %p147 = por %p145, %p146
      %p148 = scmp.ne.s32.totalorder %s139, %s140
      %p149 = scmp.eq.s32.totalorder %s24, 0
      %p150 = por %p148, %p149
      %p151 = scmp.ne.s32.totalorder %s139, %s140
      %p152 = scmp.eq.s32.totalorder %s25, 1
      %p153 = por %p151, %p152
      %p155 = scmp.ne.s32.totalorder %s140, %s154
      %p156 = scmp.eq.s32.totalorder %s25, 0
      %p157 = por %p155, %p156
      %s159 = sadd.s32 %s158, 1
      %p162 = scmp.eq.s32.totalorder %s19, 1
      %p163 = scmp.ne.s32.totalorder %s158, %s160
      %p164 = scmp.eq.s32.totalorder %s19, 0
      %p165 = por %p163, %p164
      %p166 = scmp.ne.s32.totalorder %s158, %s160
      %p167 = scmp.eq.s32.totalorder %s24, 1
      %p168 = por %p166, %p167
      %p169 = scmp.ne.s32.totalorder %s160, %s161
      %p170 = scmp.eq.s32.totalorder %s24, 0
      %p171 = por %p169, %p170
      %p172 = scmp.ne.s32.totalorder %s160, %s161
      %p173 = scmp.eq.s32.totalorder %s25, 1
      %p174 = por %p172, %p173
      %p176 = scmp.ne.s32.totalorder %s161, %s175
      %p177 = scmp.eq.s32.totalorder %s25, 0
      %p178 = por %p176, %p177
      %s179 = ssub.s32 %s19, %s26
      %p180 = scmp.eq.s32.totalorder %s179, 0
      %s182 = sadd.s32 %s181, 1
      %s183 = scalar_select %p180, %s181, %s182
      %p186 = pneg %p180
      %p187 = scmp.eq.s32.totalorder %s19, 1
      %p188 = por %p186, %p187
      %p189 = scmp.ne.s32.totalorder %s181, %s184
      %p190 = scmp.eq.s32.totalorder %s19, 0
      %p191 = por %p189, %p190
      %p192 = scmp.ne.s32.totalorder %s181, %s184
      %p193 = scmp.eq.s32.totalorder %s24, 1
      %p194 = por %p192, %p193
      %p195 = scmp.ne.s32.totalorder %s184, %s185
      %p196 = scmp.eq.s32.totalorder %s24, 0
      %p197 = por %p195, %p196
      %p198 = scmp.ne.s32.totalorder %s184, %s185
      %p199 = scmp.eq.s32.totalorder %s25, 1
      %p200 = por %p198, %p199
      %p202 = scmp.ne.s32.totalorder %s185, %s201
      %p203 = scmp.eq.s32.totalorder %s25, 0
      %p204 = por %p202, %p203
      %p205 = scmp.le.s32.totalorder 1, %s19
      %p206 = scmp.lt.s32.totalorder %s19, 3
      %p207 = pnand %p205, %p206
      %p208 = pneg %p207
      // Predicated region
      $region9: #{tpu_custom_call.1} parent=5 // pred_check
        _
      $region10: #{tpu_custom_call.1} parent=5 // pred_check_branch
        %210 = sbr.rel (%p207) target = $region12
      $region11: #{tpu_custom_call.1} parent=5 // pred_region
        %s211 = ssub.s32 %s19, 1
        // Predicated region
        $region13: #{tpu_custom_call.1} parent=11 // pred_check
          %p212 = pneg %p66
        $region14: #{tpu_custom_call.1} parent=11 // pred_check_branch
          %214 = sbr.rel (%p212) target = $region16
        $region15: #{tpu_custom_call.1} parent=11 // pred_region
          _
        $region16: #{tpu_custom_call.1} parent=11 // pred_fallthru
          _
        // Predicated region
        $region17: #{tpu_custom_call.1} parent=11 // pred_check
          %p215 = pneg %p87
        $region18: #{tpu_custom_call.1} parent=11 // pred_check_branch
          %217 = sbr.rel (%p215) target = $region20
        $region19: #{tpu_custom_call.1} parent=11 // pred_region
          _
        $region20: #{tpu_custom_call.1} parent=11 // pred_fallthru
          _
        // Predicated region
        $region21: #{tpu_custom_call.1} parent=11 // pred_check
          %p218 = pneg %p108
        $region22: #{tpu_custom_call.1} parent=11 // pred_check_branch
          %220 = sbr.rel (%p218) target = $region24
        $region23: #{tpu_custom_call.1} parent=11 // pred_region
          _
        $region24: #{tpu_custom_call.1} parent=11 // pred_fallthru
          _
        // Predicated region
        $region25: #{tpu_custom_call.1} parent=11 // pred_check
          %p221 = pneg %p129
        $region26: #{tpu_custom_call.1} parent=11 // pred_check_branch
          %223 = sbr.rel (%p221) target = $region28
        $region27: #{tpu_custom_call.1} parent=11 // pred_region
          _
        $region28: #{tpu_custom_call.1} parent=11 // pred_fallthru
          _
        // Predicated region
        $region29: #{tpu_custom_call.1} parent=11 // pred_check
          %p224 = pneg %p150
        $region30: #{tpu_custom_call.1} parent=11 // pred_check_branch
          %226 = sbr.rel (%p224) target = $region32
        $region31: #{tpu_custom_call.1} parent=11 // pred_region
          _
        $region32: #{tpu_custom_call.1} parent=11 // pred_fallthru
          _
        // Predicated region
        $region33: #{tpu_custom_call.1} parent=11 // pred_check
          %p227 = pneg %p171
        $region34: #{tpu_custom_call.1} parent=11 // pred_check_branch
          %229 = sbr.rel (%p227) target = $region36
        $region35: #{tpu_custom_call.1} parent=11 // pred_region
          _
        $region36: #{tpu_custom_call.1} parent=11 // pred_fallthru
          _
      $region12: #{tpu_custom_call.1} parent=5 // pred_fallthru
        _
      %p230 = scmp.lt.s32.totalorder %s19, 2
      // Predicated region
      $region37: #{tpu_custom_call.1} parent=5 // pred_check
        %p231 = pneg %p230
      $region38: #{tpu_custom_call.1} parent=5 // pred_check_branch
        %233 = sbr.rel (%p231) target = $region40
      $region39: #{tpu_custom_call.1} parent=5 // pred_region
        // Predicated region
        $region41: #{tpu_custom_call.1} parent=39 // pred_check
          %p234 = pneg %p39
        $region42: #{tpu_custom_call.1} parent=39 // pred_check_branch
          %236 = sbr.rel (%p234) target = $region44
        $region43: #{tpu_custom_call.1} parent=39 // pred_region
          %s237 = sand.u32 %s29, 1
          %s238 = scalar_lea.sflag [#allocation3], %s237
          %s239 = sand.u32 %s29, 1
          %s240 = smul.addr %s239, 64
          %s241 = scalar_lea.vmem [#allocation2], %s240
          %s243 = ssub.s32 1024, 1024
          %244 = vsyncadd %s238, %s243
          %s245 = smul.addr %s19, 8
          %s246 = smul.addr %s245, 128
          %s247 = scalar_lea.hbm %s0, %s246
          %s248 = sshll.u32 %s241, 4
          %s249 = int_to_ptr.vmem [resolvable:$true] %s248
          %254 = dma.hbm_to_vmem [thread:$0]  %s247, 1024, %s249, %s238, 256, 256, 16
        $region44: #{tpu_custom_call.1} parent=39 // pred_fallthru
          _
      $region40: #{tpu_custom_call.1} parent=5 // pred_fallthru
        _
      %p255 = scmp.le.s32.totalorder 1, %s19
      %p256 = scmp.lt.s32.totalorder %s19, 3
      %p257 = pnand %p255, %p256
      %p258 = pneg %p257
      // Predicated region
      $region45: #{tpu_custom_call.1} parent=5 // pred_check
        _
      $region46: #{tpu_custom_call.1} parent=5 // pred_check_branch
        %260 = sbr.rel (%p257) target = $region48
      $region47: #{tpu_custom_call.1} parent=5 // pred_region
        %s261 = ssub.s32 %s19, 1
        %s262 = sand.u32 %s32, 1
        %s263 = scalar_lea.sflag [#allocation3], %s262
        %s264 = sand.u32 %s32, 1
        %s265 = smul.addr %s264, 64
        %s266 = scalar_lea.vmem [#allocation2], %s265
        // Predicated region
        $region49: #{tpu_custom_call.1} parent=47 // pred_check
          %p267 = pneg %p45
        $region50: #{tpu_custom_call.1} parent=47 // pred_check_branch
          %269 = sbr.rel (%p267) target = $region52
        $region51: #{tpu_custom_call.1} parent=47 // pred_region
          %270 = dma.done %s263, 1024
        $region52: #{tpu_custom_call.1} parent=47 // pred_fallthru
          _
        %s271 = sand.u32 %s32, 1
        %s272 = scalar_lea.sflag [#allocation3], %s271
        %s273 = sand.u32 %s32, 1
        %s274 = smul.addr %s273, 64
        %s275 = scalar_lea.vmem [#allocation2], %s274
        %p276 = pneg %p45
        %p277 = pneg %p42
        %p278 = pneg %p66
        %p279 = pneg %p63
        %p280 = pneg %p87
        %p281 = pneg %p84
        %p282 = pneg %p108
        %p283 = pneg %p105
        %p284 = pneg %p129
        %p285 = pneg %p126
        %p286 = pneg %p150
        %p287 = pneg %p147
        %p288 = pneg %p171
        %p289 = pneg %p168
        %p290 = pneg %p197
        %p291 = pneg %p194
        %s292 = sand.u32 %s184, 1
        %s293 = scalar_lea.sflag [#allocation4], %s292
        %s294 = sand.u32 %s184, 1
        %s295 = smul.addr %s294, 64
        %s296 = scalar_lea.vmem [#allocation5], %s295
        %v297 = vld [vmem:[%s3] sm:$0x3]
        %v298 = vld [vmem:[%s2] sm:$0xf]
        %v299 = vld [vmem:[%s4] sm:$0xff]
        %v300 = vld [vmem:[%s4 + $0x8] sm:$0xff]
        %v301 = vld [vmem:[%s4 + $0x10] sm:$0xff]
        %v302 = vld [vmem:[%s4 + $0x18] sm:$0xff]
        %v303 = vld [vmem:[%s5] sm:$0x3]
        %v304 = vld [vmem:[%s6] sm:$0x1]
        %v305 = vld [vmem:[%s1] sm:$0xff]
        %v306 = vld [vmem:[%s1 + $0x8] sm:$0xff]
        %v307 = vld [vmem:[%s1 + $0x10] sm:$0x1]
        %v308 = vld [vmem:[%s1 + $0x18] sm:$0x1]
        %v309 = vld [vmem:[%s266] sm:$0xff]
        %v310 = vld [vmem:[%s266 + $0x8] sm:$0xff]
        %v311 = vld [vmem:[%s266 + $0x10] sm:$0xff]
        %v312 = vld [vmem:[%s266 + $0x18] sm:$0xff]
        %v313 = vld [vmem:[%s266 + $0x20] sm:$0xff]
        %v314 = vld [vmem:[%s266 + $0x28] sm:$0xff]
        %v315 = vld [vmem:[%s266 + $0x30] sm:$0xff]
        %v316 = vld [vmem:[%s266 + $0x38] sm:$0xff]
        %vm317 = vcmask 261120
        %v319 = vsel %vm317, %v298, 0
        %321 = vmatprep.subr.mxu0 %v310
        %322 = vmatpush1.msra.mxu0 %v309
        %323 = vmatprep.subr.mxu0 %v312
        %324 = vmatpush1.msra.mxu0 %v311
        %325 = vmatprep.subr.mxu0 %v314
        %326 = vmatpush1.msra.mxu0 %v313
        %327 = vmatprep.subr.mxu0 %v316
        %328 = vmatpush1.msra.mxu0 %v315
        %329 = vmatprep.subr.mxu0 0.0
        %330 = vmatpush1.msra.mxu0 0.0
        %331 = vmatprep.subr.mxu0 0.0
        %332 = vmatpush1.msra.mxu0 0.0
        %333 = vmatprep.subr.mxu0 0.0
        %334 = vmatpush1.msra.mxu0 0.0
        %335 = vmatprep.subr.mxu0 0.0
        %336 = vmatpush1.msra.mxu0 0.0
        %337 = vmatprep.subr.mxu0 0.0
        %338 = vmatpush1.msra.mxu0 0.0
        %339 = vmatprep.subr.mxu0 0.0
        %340 = vmatpush1.msra.mxu0 0.0
        %341 = vmatprep.subr.mxu0 0.0
        %342 = vmatpush1.msra.mxu0 0.0
        %343 = vmatprep.subr.mxu0 0.0
        %344 = vmatpush1.msra.mxu0 0.0
        %345 = vmatprep.subr.mxu0 0.0
        %346 = vmatpush1.msra.mxu0 0.0
        %347 = vmatprep.subr.mxu0 0.0
        %348 = vmatpush1.msra.mxu0 0.0
        %349 = vmatprep.subr.mxu0 0.0
        %350 = vmatpush1.msra.mxu0 0.0
        %351 = vmatprep.subr.mxu0 0.0
        %352 = vmatpush1.msra.mxu0 0.0
        %353 = vmatprep.subr.mxu0 0.0
        %354 = vmatpush1.msra.mxu0 0.0
        %355 = vmatprep.subr.mxu0 0.0
        %356 = vmatpush1.msra.mxu0 0.0
        %357 = vmatprep.subr.mxu0 0.0
        %358 = vmatpush1.msra.mxu0 0.0
        %359 = vmatprep.subr.mxu0 0.0
        %360 = vmatpush1.msra.mxu0 0.0
        %361 = vmatprep.subr.mxu0 0.0
        %362 = vmatpush1.msra.mxu0 0.0
        %363 = vmatprep.subr.mxu0 0.0
        %364 = vmatpush1.msra.mxu0 0.0
        %365 = vmatprep.subr.mxu0 0.0
        %366 = vmatpush1.msra.mxu0 0.0
        %367 = vmatprep.subr.mxu0 0.0
        %368 = vmatpush1.msra.mxu0 0.0
        %369 = vmatprep.subr.mxu0 0.0
        %370 = vmatpush1.msra.mxu0 0.0
        %371 = vmatprep.subr.mxu0 0.0
        %372 = vmatpush1.msra.mxu0 0.0
        %373 = vmatprep.subr.mxu0 0.0
        %374 = vmatpush1.msra.mxu0 0.0
        %375 = vmatprep.subr.mxu0 0.0
        %376 = vmatpush1.msra.mxu0 0.0
        %377 = vmatprep.subr.mxu0 0.0
        %378 = vmatpush1.msra.mxu0 0.0
        %379 = vmatprep.subr.mxu0 0.0
        %380 = vmatpush1.msra.mxu0 0.0
        %381 = vmatprep.subr.mxu0 0.0
        %382 = vmatpush1.msra.mxu0 0.0
        %383 = vmatprep.subr.mxu0 0.0
        %384 = vmatpush1.msra.mxu0 0.0
        %385 = vmatprep.mubr.f32.mxu0 0.0
        %386 = vmatmul.mubr.f32.gmra.mrb[0].mxu0 %v319
        %v387 = vpop.f32.mrb[0].mxu0
        %v388 = vadd.f32 0.0, %v387
        %v389 = vpop.f32.mrb[0].mxu0
        %v390 = vadd.f32 0.0, %v389
        %391 = vdwg.mxu0
        %vm392 = vcmask 1043458
        %v393 = vsel %vm392, %v388, 0.0
        %v394 = vsel %vm392, %v390, 0.0
        %v395 = vadd.f32 %v393, %v394
        %396 = vadd.xlane.f32.xlu0 %v395
        %v397 = vpop.xlane.xlu0 %396
        %v398 = vrcp.pop 256.0
        %v399 = vmul.f32 %v397, %v398
        %v401 = vrot.slane %v297, 6
        %v403 = vadd.f32 %v399, %v401
        %404 = vrot.lane.b32.xlu0 %v401, 127
        %v405 = vpop.permute.xlu0 %404
        %v407 = vmul.f32 %v403, %v405
        %408 = vrot.lane.b32.xlu0 %v401, 126
        %v409 = vpop.permute.xlu0 %408
        %v411 = vadd.f32 %v407, %v409
        %v412 = vmax.f32 %v411, 0.0
        %v413 = vlaneseq
        %v414 = vshrl.u32 %v413, 7
        %v415 = vsub.s32 2, %v414
        %v416 = vrot.slane %v412, %v415
        %v417 = vmul.f32 %v299, %v416
        %v418 = vmul.f32 %v300, %v416
        %v419 = vmul.f32 %v301, %v416
        %v420 = vmul.f32 %v302, %v416
        %425 = vrot.lane.b32.xlu0 %v417, 2
        %v426 = vpop.permute.xlu0 %425
        %427 = vrot.lane.b32.xlu0 %v418, 2
        %v428 = vpop.permute.xlu0 %427
        %429 = vrot.lane.b32.xlu0 %v419, 2
        %v430 = vpop.permute.xlu0 %429
        %431 = vrot.lane.b32.xlu0 %v420, 2
        %v432 = vpop.permute.xlu0 %431
        %v437 = vadd.f32 %v299, %v426
        %v438 = vadd.f32 %v300, %v428
        %v439 = vadd.f32 %v301, %v430
        %v440 = vadd.f32 %v302, %v432
        %v441 = vlaneseq
        %v442 = vshrl.u32 %v441, 7
        %v443 = vsub.s32 3, %v442
        %v444 = vrot.slane %v412, %v443
        %446 = vrot.lane.b32.xlu0 %v444, 1
        %v447 = vpop.permute.xlu0 %446
        %v449 = vmul.f32 %v299, %v447
        %v450 = vmul.f32 %v300, %v447
        %v451 = vmul.f32 %v301, %v447
        %v452 = vmul.f32 %v302, %v447
        %457 = vrot.lane.b32.xlu0 %v449, 1
        %v458 = vpop.permute.xlu0 %457
        %459 = vrot.lane.b32.xlu0 %v450, 1
        %v460 = vpop.permute.xlu0 %459
        %461 = vrot.lane.b32.xlu0 %v451, 1
        %v462 = vpop.permute.xlu0 %461
        %463 = vrot.lane.b32.xlu0 %v452, 1
        %v464 = vpop.permute.xlu0 %463
        %v469 = vadd.f32 %v437, %v458
        %v470 = vadd.f32 %v438, %v460
        %v471 = vadd.f32 %v439, %v462
        %v472 = vadd.f32 %v440, %v464
        %473 = vset.pattern.permute.xlu0 3
        %474 = vperm.xlu0 %473, %v297
        %v475 = vpop.permute.xlu0 %474
        %v477 = vadd.f32 %v388, %v475
        %v478 = vadd.f32 %v390, %v475
        %479 = vset.pattern.permute.xlu0 4
        %480 = vperm.xlu0 %479, %v297
        %v481 = vpop.permute.xlu0 %480
        %v483 = vmul.f32 %v477, %v481
        %v484 = vmul.f32 %v478, %v481
        %485 = vset.pattern.permute.xlu0 5
        %486 = vperm.xlu0 %485, %v297
        %v487 = vpop.permute.xlu0 %486
        %v489 = vadd.f32 %v483, %v487
        %v490 = vadd.f32 %v484, %v487
        %v491 = vmax.f32 %v489, 0.0
        %v492 = vmax.f32 %v490, 0.0
        %493 = vrot.lane.b32.xlu0 %v491, 68
        %v494 = vpop.permute.xlu0 %493
        %495 = vrot.lane.b32.xlu0 %v492, 68
        %v496 = vpop.permute.xlu0 %495
        %v497 = vlaneseq
        %v498 = vand.u32 %v497, 127
        %vm499 = vcmp.lt.s32.totalorder %v498, 68
        %v500 = vsel %vm499, %v494, %v496
        %v501 = vsel %vm499, %v496, %v494
        %v502 = vlaneseq
        %v503 = vshrl.u32 %v502, 7
        %v504 = vsub.s32 0, %v503
        %v505 = vrot.slane %v305, %v504
        %v506 = vlaneseq
        %v507 = vshrl.u32 %v506, 7
        %v508 = vsub.s32 0, %v507
        %v509 = vrot.slane %v306, %v508
        %v510 = vmul.f32 %v501, %v505
        %v511 = vmul.f32 %v500, %v509
        %512 = vrot.lane.b32.xlu0 %v491, 64
        %v513 = vpop.permute.xlu0 %512
        %514 = vrot.lane.b32.xlu0 %v492, 64
        %v515 = vpop.permute.xlu0 %514
        %vm516 = vcmp.lt.s32.totalorder %v498, 64
        %v517 = vsel %vm516, %v513, %v515
        %v518 = vsel %vm516, %v515, %v513
        %v519 = vlaneseq
        %v520 = vshrl.u32 %v519, 7
        %v521 = vsub.s32 1, %v520
        %v522 = vrot.slane %v305, %v521
        %v523 = vlaneseq
        %v524 = vshrl.u32 %v523, 7
        %v525 = vsub.s32 1, %v524
        %v526 = vrot.slane %v306, %v525
        %v527 = vmul.f32 %v518, %v522
        %v528 = vmul.f32 %v517, %v526
        %529 = vrot.lane.b32.xlu0 %v491, 60
        %v530 = vpop.permute.xlu0 %529
        %531 = vrot.lane.b32.xlu0 %v492, 60
        %v532 = vpop.permute.xlu0 %531
        %vm533 = vcmp.lt.s32.totalorder %v498, 60
        %v534 = vsel %vm533, %v530, %v532
        %v535 = vsel %vm533, %v532, %v530
        %v536 = vlaneseq
        %v537 = vshrl.u32 %v536, 7
        %v538 = vsub.s32 2, %v537
        %v539 = vrot.slane %v305, %v538
        %v540 = vlaneseq
        %v541 = vshrl.u32 %v540, 7
        %v542 = vsub.s32 2, %v541
        %v543 = vrot.slane %v306, %v542
        %v544 = vmul.f32 %v535, %v539
        %v545 = vmul.f32 %v534, %v543
        %546 = vrot.lane.b32.xlu0 %v491, 4
        %v547 = vpop.permute.xlu0 %546
        %548 = vrot.lane.b32.xlu0 %v492, 4
        %v549 = vpop.permute.xlu0 %548
        %vm550 = vcmp.lt.s32.totalorder %v498, 4
        %v551 = vsel %vm550, %v547, %v549
        %v552 = vsel %vm550, %v549, %v547
        %v553 = vlaneseq
        %v554 = vshrl.u32 %v553, 7
        %v555 = vsub.s32 3, %v554
        %v556 = vrot.slane %v305, %v555
        %v557 = vlaneseq
        %v558 = vshrl.u32 %v557, 7
        %v559 = vsub.s32 3, %v558
        %v560 = vrot.slane %v306, %v559
        %v561 = vmul.f32 %v552, %v556
        %v562 = vmul.f32 %v551, %v560
        %v563 = vlaneseq
        %v564 = vshrl.u32 %v563, 7
        %v565 = vsub.s32 4, %v564
        %v566 = vrot.slane %v305, %v565
        %v567 = vlaneseq
        %v568 = vshrl.u32 %v567, 7
        %v569 = vsub.s32 4, %v568
        %v570 = vrot.slane %v306, %v569
        %v571 = vmul.f32 %v491, %v566
        %v572 = vmul.f32 %v492, %v570
        %573 = vrot.lane.b32.xlu0 %v491, 124
        %v574 = vpop.permute.xlu0 %573
        %575 = vrot.lane.b32.xlu0 %v492, 124
        %v576 = vpop.permute.xlu0 %575
        %vm577 = vcmp.lt.s32.totalorder %v498, 124
        %v578 = vsel %vm577, %v574, %v576
        %v579 = vsel %vm577, %v576, %v574
        %v580 = vlaneseq
        %v581 = vshrl.u32 %v580, 7
        %v582 = vsub.s32 5, %v581
        %v583 = vrot.slane %v305, %v582
        %v584 = vlaneseq
        %v585 = vshrl.u32 %v584, 7
        %v586 = vsub.s32 5, %v585
        %v587 = vrot.slane %v306, %v586
        %v588 = vmul.f32 %v578, %v583
        %v589 = vmul.f32 %v579, %v587
        %v590 = vlaneseq
        %v591 = vshrl.u32 %v590, 7
        %v592 = vsub.s32 6, %v591
        %v593 = vrot.slane %v305, %v592
        %v594 = vlaneseq
        %v595 = vshrl.u32 %v594, 7
        %v596 = vsub.s32 6, %v595
        %v597 = vrot.slane %v306, %v596
        %v598 = vmul.f32 %v500, %v593
        %v599 = vmul.f32 %v501, %v597
        %v600 = vlaneseq
        %v601 = vshrl.u32 %v600, 7
        %v602 = vsub.s32 7, %v601
        %v603 = vrot.slane %v305, %v602
        %v604 = vlaneseq
        %v605 = vshrl.u32 %v604, 7
        %v606 = vsub.s32 7, %v605
        %v607 = vrot.slane %v306, %v606
        %v608 = vmul.f32 %v517, %v603
        %v609 = vmul.f32 %v518, %v607
        %v610 = vlaneseq
        %v611 = vshrl.u32 %v610, 7
        %v612 = vsub.s32 0, %v611
        %v613 = vrot.slane %v307, %v612
        %v614 = vlaneseq
        %v615 = vshrl.u32 %v614, 7
        %v616 = vsub.s32 0, %v615
        %v617 = vrot.slane %v308, %v616
        %v618 = vmul.f32 %v534, %v613
        %v619 = vmul.f32 %v535, %v617
        %v622 = vrot.slane %v527, 6
        %v623 = vrot.slane %v528, 6
        %v628 = vrot.slane %v544, 4
        %v629 = vrot.slane %v545, 4
        %v634 = vrot.slane %v561, 2
        %v635 = vrot.slane %v562, 2
        %v640 = vrot.slane %v588, 6
        %v641 = vrot.slane %v589, 6
        %v646 = vrot.slane %v598, 4
        %v647 = vrot.slane %v599, 4
        %v652 = vrot.slane %v608, 2
        %v653 = vrot.slane %v609, 2
        %vm656 = vcmask 1041408
        %v657 = vsel %vm656, %v510, %v622
        %v658 = vsel %vm656, %v511, %v623
        %vm659 = vcmask 1043456
        %v660 = vsel %vm659, %v657, %v628
        %v661 = vsel %vm659, %v658, %v629
        %vm662 = vcmask 1045504
        %v663 = vsel %vm662, %v660, %v634
        %v664 = vsel %vm662, %v661, %v635
        %v665 = vsel %vm656, %v571, %v640
        %v666 = vsel %vm656, %v572, %v641
        %v667 = vsel %vm659, %v665, %v646
        %v668 = vsel %vm659, %v666, %v647
        %v669 = vsel %vm662, %v667, %v652
        %v670 = vsel %vm662, %v668, %v653
        %671 = vset.pattern.permute.xlu0 6
        %672 = vperm.xlu0 %671, %v297
        %v673 = vpop.permute.xlu0 %672
        %vm675 = vcmask 146432
        %v677 = vsel %vm675, %v303, 0
        %v680 = vsel %vm656, %v618, 0
        %v683 = vsel %vm656, %v619, 0
        %685 = vmatprep.subr.mxu0 %v664
        %686 = vmatpush1.msra.mxu0 %v663
        %687 = vmatprep.subr.mxu0 %v670
        %688 = vmatpush1.msra.mxu0 %v669
        %689 = vmatprep.subr.mxu0 %v683
        %690 = vmatpush1.msra.mxu0 %v680
        %691 = vmatprep.subr.mxu0 0.0
        %692 = vmatpush1.msra.mxu0 0.0
        %693 = vmatprep.subr.mxu0 0.0
        %694 = vmatpush1.msra.mxu0 0.0
        %695 = vmatprep.subr.mxu0 0.0
        %696 = vmatpush1.msra.mxu0 0.0
        %697 = vmatprep.subr.mxu0 0.0
        %698 = vmatpush1.msra.mxu0 0.0
        %699 = vmatprep.subr.mxu0 0.0
        %700 = vmatpush1.msra.mxu0 0.0
        %701 = vmatprep.subr.mxu0 0.0
        %702 = vmatpush1.msra.mxu0 0.0
        %703 = vmatprep.subr.mxu0 0.0
        %704 = vmatpush1.msra.mxu0 0.0
        %705 = vmatprep.subr.mxu0 0.0
        %706 = vmatpush1.msra.mxu0 0.0
        %707 = vmatprep.subr.mxu0 0.0
        %708 = vmatpush1.msra.mxu0 0.0
        %709 = vmatprep.subr.mxu0 0.0
        %710 = vmatpush1.msra.mxu0 0.0
        %711 = vmatprep.subr.mxu0 0.0
        %712 = vmatpush1.msra.mxu0 0.0
        %713 = vmatprep.subr.mxu0 0.0
        %714 = vmatpush1.msra.mxu0 0.0
        %715 = vmatprep.subr.mxu0 0.0
        %716 = vmatpush1.msra.mxu0 0.0
        %717 = vmatprep.subr.mxu0 0.0
        %718 = vmatpush1.msra.mxu0 0.0
        %719 = vmatprep.subr.mxu0 0.0
        %720 = vmatpush1.msra.mxu0 0.0
        %721 = vmatprep.subr.mxu0 0.0
        %722 = vmatpush1.msra.mxu0 0.0
        %723 = vmatprep.subr.mxu0 0.0
        %724 = vmatpush1.msra.mxu0 0.0
        %725 = vmatprep.subr.mxu0 0.0
        %726 = vmatpush1.msra.mxu0 0.0
        %727 = vmatprep.subr.mxu0 0.0
        %728 = vmatpush1.msra.mxu0 0.0
        %729 = vmatprep.subr.mxu0 0.0
        %730 = vmatpush1.msra.mxu0 0.0
        %731 = vmatprep.subr.mxu0 0.0
        %732 = vmatpush1.msra.mxu0 0.0
        %733 = vmatprep.subr.mxu0 0.0
        %734 = vmatpush1.msra.mxu0 0.0
        %735 = vmatprep.subr.mxu0 0.0
        %736 = vmatpush1.msra.mxu0 0.0
        %737 = vmatprep.subr.mxu0 0.0
        %738 = vmatpush1.msra.mxu0 0.0
        %739 = vmatprep.subr.mxu0 0.0
        %740 = vmatpush1.msra.mxu0 0.0
        %741 = vmatprep.subr.mxu0 0.0
        %742 = vmatpush1.msra.mxu0 0.0
        %743 = vmatprep.subr.mxu0 0.0
        %744 = vmatpush1.msra.mxu0 0.0
        %745 = vmatprep.subr.mxu0 0.0
        %746 = vmatpush1.msra.mxu0 0.0
        %747 = vmatprep.subr.mxu0 0.0
        %748 = vmatpush1.msra.mxu0 0.0
        %749 = vmatprep.mubr.f32.mxu0 0.0
        %750 = vmatmul.mubr.f32.gmra.mrb[0].mxu0 %v677
        %v751 = vpop.f32.mrb[0].mxu0
        %v752 = vadd.f32 %v673, %v751
        %v753 = vpop.f32.mrb[0].mxu0
        %v754 = vadd.f32 %v673, %v753
        %755 = vdwg.mxu0
        %756 = vset.pattern.permute.xlu0 7
        %757 = vperm.xlu0 %756, %v297
        %v758 = vpop.permute.xlu0 %757
        %v760 = vmul.f32 %v752, %v758
        %v761 = vmul.f32 %v754, %v758
        %762 = vset.pattern.permute.xlu0 8
        %763 = vperm.xlu0 %762, %v297
        %v764 = vpop.permute.xlu0 %763
        %v766 = vadd.f32 %v760, %v764
        %v767 = vadd.f32 %v761, %v764
        %v768 = vmax.f32 %v766, 0.0
        %v769 = vmax.f32 %v767, 0.0
        %770 = vrot.lane.b32.xlu0 %v768, 68
        %v771 = vpop.permute.xlu0 %770
        %772 = vrot.lane.b32.xlu0 %v769, 68
        %v773 = vpop.permute.xlu0 %772
        %v774 = vsel %vm499, %v771, %v773
        %v775 = vsel %vm499, %v773, %v771
        %v776 = vmul.f32 %v775, %v505
        %v777 = vmul.f32 %v774, %v509
        %778 = vrot.lane.b32.xlu0 %v768, 64
        %v779 = vpop.permute.xlu0 %778
        %780 = vrot.lane.b32.xlu0 %v769, 64
        %v781 = vpop.permute.xlu0 %780
        %v782 = vsel %vm516, %v779, %v781
        %v783 = vsel %vm516, %v781, %v779
        %v784 = vmul.f32 %v783, %v522
        %v785 = vmul.f32 %v782, %v526
        %786 = vrot.lane.b32.xlu0 %v768, 60
        %v787 = vpop.permute.xlu0 %786
        %788 = vrot.lane.b32.xlu0 %v769, 60
        %v789 = vpop.permute.xlu0 %788
        %v790 = vsel %vm533, %v787, %v789
        %v791 = vsel %vm533, %v789, %v787
        %v792 = vmul.f32 %v791, %v539
        %v793 = vmul.f32 %v790, %v543
        %794 = vrot.lane.b32.xlu0 %v768, 4
        %v795 = vpop.permute.xlu0 %794
        %796 = vrot.lane.b32.xlu0 %v769, 4
        %v797 = vpop.permute.xlu0 %796
        %v798 = vsel %vm550, %v795, %v797
        %v799 = vsel %vm550, %v797, %v795
        %v800 = vmul.f32 %v799, %v556
        %v801 = vmul.f32 %v798, %v560
        %v802 = vmul.f32 %v768, %v566
        %v803 = vmul.f32 %v769, %v570
        %804 = vrot.lane.b32.xlu0 %v768, 124
        %v805 = vpop.permute.xlu0 %804
        %806 = vrot.lane.b32.xlu0 %v769, 124
        %v807 = vpop.permute.xlu0 %806
        %v808 = vsel %vm577, %v805, %v807
        %v809 = vsel %vm577, %v807, %v805
        %v810 = vmul.f32 %v808, %v583
        %v811 = vmul.f32 %v809, %v587
        %v812 = vmul.f32 %v774, %v593
        %v813 = vmul.f32 %v775, %v597
        %v814 = vmul.f32 %v782, %v603
        %v815 = vmul.f32 %v783, %v607
        %v816 = vmul.f32 %v790, %v613
        %v817 = vmul.f32 %v791, %v617
        %v820 = vrot.slane %v784, 6
        %v821 = vrot.slane %v785, 6
        %v826 = vrot.slane %v792, 4
        %v827 = vrot.slane %v793, 4
        %v832 = vrot.slane %v800, 2
        %v833 = vrot.slane %v801, 2
        %v838 = vrot.slane %v810, 6
        %v839 = vrot.slane %v811, 6
        %v844 = vrot.slane %v812, 4
        %v845 = vrot.slane %v813, 4
        %v850 = vrot.slane %v814, 2
        %v851 = vrot.slane %v815, 2
        %v854 = vsel %vm656, %v776, %v820
        %v855 = vsel %vm656, %v777, %v821
        %v856 = vsel %vm659, %v854, %v826
        %v857 = vsel %vm659, %v855, %v827
        %v858 = vsel %vm662, %v856, %v832
        %v859 = vsel %vm662, %v857, %v833
        %v860 = vsel %vm656, %v802, %v838
        %v861 = vsel %vm656, %v803, %v839
        %v862 = vsel %vm659, %v860, %v844
        %v863 = vsel %vm659, %v861, %v845
        %v864 = vsel %vm662, %v862, %v850
        %v865 = vsel %vm662, %v863, %v851
        %866 = vset.pattern.permute.xlu0 9
        %867 = vperm.xlu0 %866, %v297
        %v868 = vpop.permute.xlu0 %867
        %870 = vrot.lane.b32.xlu0 %v303, 110
        %v871 = vpop.permute.xlu0 %870
        %v872 = vsel %vm675, %v871, 0
        %v875 = vsel %vm656, %v816, 0
        %v878 = vsel %vm656, %v817, 0
        %880 = vmatprep.subr.mxu0 %v859
        %881 = vmatpush1.msra.mxu0 %v858
        %882 = vmatprep.subr.mxu0 %v865
        %883 = vmatpush1.msra.mxu0 %v864
        %884 = vmatprep.subr.mxu0 %v878
        %885 = vmatpush1.msra.mxu0 %v875
        %886 = vmatprep.subr.mxu0 0.0
        %887 = vmatpush1.msra.mxu0 0.0
        %888 = vmatprep.subr.mxu0 0.0
        %889 = vmatpush1.msra.mxu0 0.0
        %890 = vmatprep.subr.mxu0 0.0
        %891 = vmatpush1.msra.mxu0 0.0
        %892 = vmatprep.subr.mxu0 0.0
        %893 = vmatpush1.msra.mxu0 0.0
        %894 = vmatprep.subr.mxu0 0.0
        %895 = vmatpush1.msra.mxu0 0.0
        %896 = vmatprep.subr.mxu0 0.0
        %897 = vmatpush1.msra.mxu0 0.0
        %898 = vmatprep.subr.mxu0 0.0
        %899 = vmatpush1.msra.mxu0 0.0
        %900 = vmatprep.subr.mxu0 0.0
        %901 = vmatpush1.msra.mxu0 0.0
        %902 = vmatprep.subr.mxu0 0.0
        %903 = vmatpush1.msra.mxu0 0.0
        %904 = vmatprep.subr.mxu0 0.0
        %905 = vmatpush1.msra.mxu0 0.0
        %906 = vmatprep.subr.mxu0 0.0
        %907 = vmatpush1.msra.mxu0 0.0
        %908 = vmatprep.subr.mxu0 0.0
        %909 = vmatpush1.msra.mxu0 0.0
        %910 = vmatprep.subr.mxu0 0.0
        %911 = vmatpush1.msra.mxu0 0.0
        %912 = vmatprep.subr.mxu0 0.0
        %913 = vmatpush1.msra.mxu0 0.0
        %914 = vmatprep.subr.mxu0 0.0
        %915 = vmatpush1.msra.mxu0 0.0
        %916 = vmatprep.subr.mxu0 0.0
        %917 = vmatpush1.msra.mxu0 0.0
        %918 = vmatprep.subr.mxu0 0.0
        %919 = vmatpush1.msra.mxu0 0.0
        %920 = vmatprep.subr.mxu0 0.0
        %921 = vmatpush1.msra.mxu0 0.0
        %922 = vmatprep.subr.mxu0 0.0
        %923 = vmatpush1.msra.mxu0 0.0
        %924 = vmatprep.subr.mxu0 0.0
        %925 = vmatpush1.msra.mxu0 0.0
        %926 = vmatprep.subr.mxu0 0.0
        %927 = vmatpush1.msra.mxu0 0.0
        %928 = vmatprep.subr.mxu0 0.0
        %929 = vmatpush1.msra.mxu0 0.0
        %930 = vmatprep.subr.mxu0 0.0
        %931 = vmatpush1.msra.mxu0 0.0
        %932 = vmatprep.subr.mxu0 0.0
        %933 = vmatpush1.msra.mxu0 0.0
        %934 = vmatprep.subr.mxu0 0.0
        %935 = vmatpush1.msra.mxu0 0.0
        %936 = vmatprep.subr.mxu0 0.0
        %937 = vmatpush1.msra.mxu0 0.0
        %938 = vmatprep.subr.mxu0 0.0
        %939 = vmatpush1.msra.mxu0 0.0
        %940 = vmatprep.subr.mxu0 0.0
        %941 = vmatpush1.msra.mxu0 0.0
        %942 = vmatprep.subr.mxu0 0.0
        %943 = vmatpush1.msra.mxu0 0.0
        %944 = vmatprep.mubr.f32.mxu0 0.0
        %945 = vmatmul.mubr.f32.gmra.mrb[0].mxu0 %v872
        %v946 = vpop.f32.mrb[0].mxu0
        %v947 = vadd.f32 %v868, %v946
        %v948 = vpop.f32.mrb[0].mxu0
        %v949 = vadd.f32 %v868, %v948
        %950 = vdwg.mxu0
        %951 = vset.pattern.permute.xlu0 10
        %952 = vperm.xlu0 %951, %v297
        %v953 = vpop.permute.xlu0 %952
        %v955 = vmul.f32 %v947, %v953
        %v956 = vmul.f32 %v949, %v953
        %957 = vset.pattern.permute.xlu0 11
        %958 = vperm.xlu0 %957, %v297
        %v959 = vpop.permute.xlu0 %958
        %v961 = vadd.f32 %v955, %v959
        %v962 = vadd.f32 %v956, %v959
        %v963 = vmax.f32 %v961, 0.0
        %v964 = vmax.f32 %v962, 0.0
        %966 = vset.pattern.permute.xlu0 0
        %967 = vperm.xlu0 %966, %v304
        %v968 = vpop.permute.xlu0 %967
        %v970 = vlaneseq
        %v971 = vshrl.u32 %v970, 7
        %v972 = vsub.s32 0, %v971
        %v973 = vrot.slane %v968, %v972
        %v974 = vmul.f32 %v973, %v963
        %v975 = vmul.f32 %v973, %v964
        %976 = vset.pattern.permute.xlu0 2
        %977 = vperm.xlu0 %976, %v304
        %v978 = vpop.permute.xlu0 %977
        %v980 = vlaneseq
        %v981 = vshrl.u32 %v980, 7
        %v982 = vsub.s32 0, %v981
        %v983 = vrot.slane %v978, %v982
        %v984 = vadd.f32 %v983, %v974
        %v985 = vadd.f32 %v983, %v975
        %986 = vset.pattern.permute.xlu0 1
        %987 = vperm.xlu0 %986, %v304
        %v988 = vpop.permute.xlu0 %987
        %v990 = vlaneseq
        %v991 = vshrl.u32 %v990, 7
        %v992 = vsub.s32 0, %v991
        %v993 = vrot.slane %v988, %v992
        %v994 = vmul.f32 %v993, %v963
        %v995 = vmul.f32 %v993, %v964
        %v998 = vrot.slane %v994, 1
        %v999 = vrot.slane %v995, 1
        %v1002 = vadd.f32 %v984, %v998
        %v1003 = vadd.f32 %v985, %v999
        %1005 = vset.pattern.permute.xlu0 2
        %1006 = vperm.xlu0 %1005, %v469
        %v1007 = vpop.permute.xlu0 %1006
        %1010 = vset.pattern.permute.xlu0 2
        %1011 = vperm.xlu0 %1010, %v470
        %v1012 = vpop.permute.xlu0 %1011
        %1015 = vset.pattern.permute.xlu0 2
        %1016 = vperm.xlu0 %1015, %v471
        %v1017 = vpop.permute.xlu0 %1016
        %1020 = vset.pattern.permute.xlu0 2
        %1021 = vperm.xlu0 %1020, %v472
        %v1022 = vpop.permute.xlu0 %1021
        %v1024 = vlaneseq
        %v1025 = vshrl.u32 %v1024, 7
        %v1026 = vsub.s32 0, %v1025
        %v1027 = vrot.slane %v1002, %v1026
        %v1028 = vlaneseq
        %v1029 = vshrl.u32 %v1028, 7
        %v1030 = vsub.s32 0, %v1029
        %v1031 = vrot.slane %v1003, %v1030
        %v1032 = vmul.f32 %v1007, %v1027
        %v1033 = vmul.f32 %v1007, %v1031
        %v1034 = vmul.f32 %v1012, %v1027
        %v1035 = vmul.f32 %v1012, %v1031
        %v1036 = vmul.f32 %v1017, %v1027
        %v1037 = vmul.f32 %v1017, %v1031
        %v1038 = vmul.f32 %v1022, %v1027
        %v1039 = vmul.f32 %v1022, %v1031
        %v1040 = vmul.f32 %v1032, 0.5
        %v1041 = vmul.f32 %v1033, 0.5
        %v1042 = vmul.f32 %v1034, 0.5
        %v1043 = vmul.f32 %v1035, 0.5
        %v1044 = vmul.f32 %v1036, 0.5
        %v1045 = vmul.f32 %v1037, 0.5
        %v1046 = vmul.f32 %v1038, 0.5
        %v1047 = vmul.f32 %v1039, 0.5
        %v1048 = vtanh.pop %v1040
        %v1049 = vtanh.pop %v1041
        %v1050 = vtanh.pop %v1042
        %v1051 = vtanh.pop %v1043
        %v1052 = vtanh.pop %v1044
        %v1053 = vtanh.pop %v1045
        %v1054 = vtanh.pop %v1046
        %v1055 = vtanh.pop %v1047
        %v1056 = vmul.f32 %v1048, 0.5
        %v1057 = vmul.f32 %v1049, 0.5
        %v1058 = vmul.f32 %v1050, 0.5
        %v1059 = vmul.f32 %v1051, 0.5
        %v1060 = vmul.f32 %v1052, 0.5
        %v1061 = vmul.f32 %v1053, 0.5
        %v1062 = vmul.f32 %v1054, 0.5
        %v1063 = vmul.f32 %v1055, 0.5
        %v1064 = vadd.f32 %v1056, 0.5
        %v1065 = vadd.f32 %v1057, 0.5
        %v1066 = vadd.f32 %v1058, 0.5
        %v1067 = vadd.f32 %v1059, 0.5
        %v1068 = vadd.f32 %v1060, 0.5
        %v1069 = vadd.f32 %v1061, 0.5
        %v1070 = vadd.f32 %v1062, 0.5
        %v1071 = vadd.f32 %v1063, 0.5
        %v1072 = vmul.f32 %v1064, %v309
        %v1073 = vmul.f32 %v1065, %v310
        %v1074 = vmul.f32 %v1066, %v311
        %v1075 = vmul.f32 %v1067, %v312
        %v1076 = vmul.f32 %v1068, %v313
        %v1077 = vmul.f32 %v1069, %v314
        %v1078 = vmul.f32 %v1070, %v315
        %v1079 = vmul.f32 %v1071, %v316
        %1080 = vst [vmem:[%s296] sm:$0xff] %v1072
        %1081 = vst [vmem:[%s296 + $0x8] sm:$0xff] %v1073
        %1082 = vst [vmem:[%s296 + $0x10] sm:$0xff] %v1074
        %1083 = vst [vmem:[%s296 + $0x18] sm:$0xff] %v1075
        %1084 = vst [vmem:[%s296 + $0x20] sm:$0xff] %v1076
        %1085 = vst [vmem:[%s296 + $0x28] sm:$0xff] %v1077
        %1086 = vst [vmem:[%s296 + $0x30] sm:$0xff] %v1078
        %1087 = vst [vmem:[%s296 + $0x38] sm:$0xff] %v1079
        %s1088 = sand.u32 %s184, 1
        %s1089 = scalar_lea.sflag [#allocation4], %s1088
        %s1090 = sand.u32 %s184, 1
        %s1091 = smul.addr %s1090, 64
        %s1092 = scalar_lea.vmem [#allocation5], %s1091
        // Predicated region
        $region53: #{tpu_custom_call.1} parent=47 // pred_check
          %p1093 = pneg %p194
        $region54: #{tpu_custom_call.1} parent=47 // pred_check_branch
          %1095 = sbr.rel (%p1093) target = $region56
        $region55: #{tpu_custom_call.1} parent=47 // pred_region
          %s1097 = ssub.s32 1024, 1024
          %1098 = vsyncadd %s1089, %s1097
          %s1099 = smul.addr %s24, 8
          %s1100 = smul.addr %s1099, 128
          %s1101 = scalar_lea.hbm %s7, %s1100
          %s1102 = sshll.u32 %s1092, 4
          %s1103 = int_to_ptr.vmem [resolvable:$true] %s1102
          %1108 = dma.vmem_to_hbm [thread:$0]  %s1103, 1024, %s1101, %s1089, 256, 256, 16
        $region56: #{tpu_custom_call.1} parent=47 // pred_fallthru
          _
      $region48: #{tpu_custom_call.1} parent=5 // pred_fallthru
        _
      %p1109 = scmp.le.s32.totalorder 2, %s19
      // Predicated region
      $region57: #{tpu_custom_call.1} parent=5 // pred_check
        %p1110 = pneg %p1109
      $region58: #{tpu_custom_call.1} parent=5 // pred_check_branch
        %1112 = sbr.rel (%p1110) target = $region60
      $region59: #{tpu_custom_call.1} parent=5 // pred_region
        %s1113 = ssub.s32 %s19, 2
        // Predicated region
        $region61: #{tpu_custom_call.1} parent=59 // pred_check
          %p1114 = pneg %p200
        $region62: #{tpu_custom_call.1} parent=59 // pred_check_branch
          %1116 = sbr.rel (%p1114) target = $region64
        $region63: #{tpu_custom_call.1} parent=59 // pred_region
          %s1117 = sand.u32 %s185, 1
          %s1118 = scalar_lea.sflag [#allocation4], %s1117
          %s1119 = sand.u32 %s185, 1
          %s1120 = smul.addr %s1119, 64
          %s1121 = scalar_lea.vmem [#allocation5], %s1120
          %1122 = dma.done %s1118, 1024
        $region64: #{tpu_custom_call.1} parent=59 // pred_fallthru
          _
      $region60: #{tpu_custom_call.1} parent=5 // pred_fallthru
        _
    $region6: #{tpu_custom_call.1} parent=1 // loop_footer
      %s23 = sadd.s32 1, %s19
    $region7: #{tpu_custom_call.1} parent=1 // loop_footer_branch
      %18 = sbr.rel target = $region3
    $region8: #{tpu_custom_call.1} parent=1 // loop_exit
      _
    %1123 = vsyncpa [#allocation3], 1
    %s1124 = scalar_lea.sflag [#allocation3], 1
    %1125 = vsyncpa %s1124, 1
    %1126 = vsyncpa [#allocation4], 1
    %s1127 = scalar_lea.sflag [#allocation4], 1
    %1128 = vsyncpa %s1127, 1

</llo_original>
